<compile_context>
chip_gen: v5e
topology: v5e:2x2
jax: 0.10.0
libtpu: 0.0.40
codegen_flags: <defaults>
</compile_context>

<pallas_src>
import functools

import jax
import jax.numpy as jnp
from jax.experimental import pallas as pl
from jax.experimental.pallas import tpu as pltpu


def _se_kernel(x_ref, w1_ref, b1_ref, w2_ref, b2_ref, out_ref, *, inv_l):
    # x_ref: (Bt, C, L) slab for the current batch tile.
    x = x_ref[...]
    x_f32 = x.astype(jnp.float32)                                # f32 accumulation
    # Squeeze: global average pool over the length axis.
    y = jnp.sum(x_f32, axis=-1) * inv_l                          # (Bt, C)
    # Excitation: Linear -> ReLU -> Linear -> Sigmoid. H = C // reduction is
    # tiny, so these dots are negligible FLOPs vs. the HBM-bound x traffic.
    h = jnp.dot(y, w1_ref[...], preferred_element_type=jnp.float32) + b1_ref[...]
    h = jnp.maximum(h, 0.0)                                      # (Bt, H)
    s = jnp.dot(h, w2_ref[...], preferred_element_type=jnp.float32) + b2_ref[...]
    s = jax.nn.sigmoid(s)                                        # (Bt, C)
    # Scale: broadcast the per-(batch, channel) gate over the length axis and
    # cast only at the store (bf16-safe).
    out_ref[...] = (x_f32 * s[:, :, None]).astype(out_ref.dtype)


def se_block(x, w1, b1, w2, b2, *, target_block_bytes=4 * 1024 * 1024,
             vmem_cap_bytes=48 * 1024 * 1024):
    """x: (B, C, L); w1: (C, H); b1: (H,) or (1, H); w2: (H, C); b2: (C,) or (1, C)."""
    B, C, L = x.shape
    H = w1.shape[1]
    b1 = jnp.reshape(b1, (1, H))
    b2 = jnp.reshape(b2, (1, C))

    itemsize = jnp.dtype(x.dtype).itemsize
    per_sample = C * L * itemsize                 # bytes of one batch element's slab
    w_bytes = sum(int(a.size) * jnp.dtype(a.dtype).itemsize
                  for a in (w1, b1, w2, b2))
    headroom = 2 * 1024 * 1024
    # Double-buffered in + out blocks ~= 4x block bytes; weights count twice
    # (their BlockSpecs are also buffered) plus headroom for compiler scratch.
    budget = max(vmem_cap_bytes - 2 * w_bytes - headroom, 4 * per_sample)

    if 4 * per_sample > vmem_cap_bytes:
        # TODO(synk): add an L-tiled two-pass path (pass 1: accumulate channel
        # sums + excitation gate; pass 2: apply scale) for C*L slabs that do
        # not fit a single-step VMEM budget even at Bt=1 (hit first on v7x).
        pass

    max_bt_vmem = max(1, budget // (4 * per_sample))
    target_bt = max(1, target_block_bytes // per_sample)
    bt = int(min(B, max_bt_vmem, target_bt))
    if B >= 2:
        # Keep at least 2 grid steps so v7x's two TensorCores both get work.
        bt = min(bt, (B + 1) // 2)
    grid_b = pl.cdiv(B, bt)

    footprint = 4 * bt * per_sample + 2 * w_bytes + headroom
    vmem_limit = int(min(max(footprint, 8 * 1024 * 1024), vmem_cap_bytes))

    kernel = functools.partial(_se_kernel, inv_l=float(1.0 / L))

    return pl.pallas_call(
        kernel,
        out_shape=jax.ShapeDtypeStruct((B, C, L), x.dtype),
        grid=(grid_b,),
        in_specs=[
            # x: one batch tile per step; last two dims are full extents, so no
            # lane padding / pad-slice round-trip is needed for any L.
            pl.BlockSpec((bt, C, L), lambda b: (b, 0, 0)),
            pl.BlockSpec((C, H), lambda b: (0, 0)),   # w1: resident
            pl.BlockSpec((1, H), lambda b: (0, 0)),   # b1: resident
            pl.BlockSpec((H, C), lambda b: (0, 0)),   # w2: resident
            pl.BlockSpec((1, C), lambda b: (0, 0)),   # b2: resident
        ],
        out_specs=pl.BlockSpec((bt, C, L), lambda b: (b, 0, 0)),
        compiler_params=pltpu.CompilerParams(
            dimension_semantics=("parallel",),        # shard batch tiles across v7x's 2 TCs
            vmem_limit_bytes=vmem_limit,              # shape-derived, v7x-safe cap
        ),
    )(x, w1, b1, w2, b2)


def se_block_ref(x, w1, b1, w2, b2):
    """Pure-JAX reference matching the PyTorch forward (computed in f32)."""
    xf = x.astype(jnp.float32)
    y = jnp.mean(xf, axis=-1)
    h = jnp.maximum(y @ w1 + jnp.reshape(b1, (1, -1)), 0.0)
    s = jax.nn.sigmoid(h @ w2 + jnp.reshape(b2, (1, -1)))
    return xf * s[:, :, None]


if __name__ == "__main__":
    # Small shapes consistent with the module: channels divisible by
    # reduction=16, so channels=32 -> hidden=2; L deliberately not a multiple
    # of 128 to exercise the no-pad path.
    B, C, L = 2, 32, 16
    reduction = 16
    H = C // reduction

    key = jax.random.PRNGKey(0)
    kx, k1, kb1, k2, kb2 = jax.random.split(key, 5)

    x = jax.random.normal(kx, (B, C, L), dtype=jnp.float32)
    # Deterministic synthetic parameters (no checkpoint load). PyTorch-style
    # 1-D biases to exercise the wrapper's reshape.
    w1 = jax.random.normal(k1, (C, H), dtype=jnp.float32) * 0.1
    b1 = jax.random.normal(kb1, (H,), dtype=jnp.float32) * 0.1
    w2 = jax.random.normal(k2, (H, C), dtype=jnp.float32) * 0.1
    b2 = jax.random.normal(kb2, (C,), dtype=jnp.float32) * 0.1

    # f32 path
    out = jax.block_until_ready(se_block(x, w1, b1, w2, b2))
    ref = se_block_ref(x, w1, b1, w2, b2)
    assert out.shape == (B, C, L)
    assert jnp.allclose(out, ref, atol=1e-5, rtol=1e-5)

    # bf16 I/O path (f32 accumulation inside the kernel)
    x_bf16 = x.astype(jnp.bfloat16)
    out_bf16 = jax.block_until_ready(se_block(x_bf16, w1, b1, w2, b2))
    ref_bf16 = se_block_ref(x_bf16, w1, b1, w2, b2)
    assert out_bf16.dtype == jnp.bfloat16
    assert jnp.allclose(out_bf16.astype(jnp.float32), ref_bf16, atol=2e-2, rtol=2e-2)

    print("KERNEL_OK")
</pallas_src>

<mosaic_0001>
module attributes {stable_mosaic.version = 11 : i64} {
  func.func @_se_kernel(%arg0: i32, %arg1: memref<1x32x16xf32, #tpu.memory_space<vmem>>, %arg2: memref<32x2xf32, #tpu.memory_space<vmem>>, %arg3: memref<1x2xf32, #tpu.memory_space<vmem>>, %arg4: memref<2x32xf32, #tpu.memory_space<vmem>>, %arg5: memref<1x32xf32, #tpu.memory_space<vmem>>, %arg6: memref<1x32x16xf32, #tpu.memory_space<vmem>>) attributes {dimension_semantics = [#tpu.dimension_semantics<parallel>], iteration_bounds = array<i64: 2>, scalar_prefetch = 0 : i64, scratch_operands = 0 : i64, tpu.core_type = #tpu.core_type<tc>, window_params = [{transform_indices = @transform_0, window_bounds = array<i64: 1, 32, 16>}, {pipeline_mode = #tpu.pipeline_mode<synchronous>, transform_indices = @transform_1, window_bounds = array<i64: 32, 2>}, {pipeline_mode = #tpu.pipeline_mode<synchronous>, transform_indices = @transform_2, window_bounds = array<i64: 1, 2>}, {pipeline_mode = #tpu.pipeline_mode<synchronous>, transform_indices = @transform_3, window_bounds = array<i64: 2, 32>}, {pipeline_mode = #tpu.pipeline_mode<synchronous>, transform_indices = @transform_4, window_bounds = array<i64: 1, 32>}, {transform_indices = @transform_5, window_bounds = array<i64: 1, 32, 16>}]} {
    %c0 = arith.constant 0 : index
    %c0_0 = arith.constant 0 : index
    %c0_1 = arith.constant 0 : index
    %0 = vector.load %arg1[%c0, %c0_0, %c0_1] : memref<1x32x16xf32, #tpu.memory_space<vmem>>, vector<1x32x16xf32>
    %cst = arith.constant dense<0.000000e+00> : vector<1x32xf32>
    %1 = vector.multi_reduction <add>, %0, %cst [2] : vector<1x32x16xf32> to vector<1x32xf32>
    %cst_2 = arith.constant 6.250000e-02 : f32
    %2 = vector.broadcast %cst_2 : f32 to vector<1x32xf32>
    %3 = arith.mulf %1, %2 : vector<1x32xf32>
    %c0_3 = arith.constant 0 : index
    %c0_4 = arith.constant 0 : index
    %4 = vector.load %arg2[%c0_3, %c0_4] : memref<32x2xf32, #tpu.memory_space<vmem>>, vector<32x2xf32>
    %cst_5 = arith.constant dense<0.000000e+00> : vector<1x2xf32>
    %5 = tpu.matmul %3, %4, %cst_5 {dimension_numbers = #tpu.dot_dimension_numbers<[1], [0], [0], [1], [0, 0, 1, 1], [], []>} : vector<1x32xf32>, vector<32x2xf32>, vector<1x2xf32> -> vector<1x2xf32>
    %c0_6 = arith.constant 0 : index
    %c0_7 = arith.constant 0 : index
    %6 = vector.load %arg3[%c0_6, %c0_7] : memref<1x2xf32, #tpu.memory_space<vmem>>, vector<1x2xf32>
    %7 = arith.addf %5, %6 : vector<1x2xf32>
    %cst_8 = arith.constant 0.000000e+00 : f32
    %8 = vector.broadcast %cst_8 : f32 to vector<1x2xf32>
    %9 = arith.maximumf %7, %8 : vector<1x2xf32>
    %c0_9 = arith.constant 0 : index
    %c0_10 = arith.constant 0 : index
    %10 = vector.load %arg4[%c0_9, %c0_10] : memref<2x32xf32, #tpu.memory_space<vmem>>, vector<2x32xf32>
    %cst_11 = arith.constant dense<0.000000e+00> : vector<1x32xf32>
    %11 = tpu.matmul %9, %10, %cst_11 {dimension_numbers = #tpu.dot_dimension_numbers<[1], [0], [0], [1], [0, 0, 1, 1], [], []>} : vector<1x2xf32>, vector<2x32xf32>, vector<1x32xf32> -> vector<1x32xf32>
    %c0_12 = arith.constant 0 : index
    %c0_13 = arith.constant 0 : index
    %12 = vector.load %arg5[%c0_12, %c0_13] : memref<1x32xf32, #tpu.memory_space<vmem>>, vector<1x32xf32>
    %13 = arith.addf %11, %12 : vector<1x32xf32>
    %14 = arith.negf %13 : vector<1x32xf32>
    %15 = math.exp %14 : vector<1x32xf32>
    %cst_14 = arith.constant 1.000000e+00 : f32
    %16 = vector.broadcast %cst_14 : f32 to vector<1x32xf32>
    %17 = arith.addf %16, %15 : vector<1x32xf32>
    %18 = arith.divf %16, %17 : vector<1x32xf32>
    %19 = vector.shape_cast %18 : vector<1x32xf32> to vector<1x32x1xf32>
    %20 = vector.broadcast %19 : vector<1x32x1xf32> to vector<1x32x16xf32>
    %21 = arith.mulf %0, %20 : vector<1x32x16xf32>
    %c0_15 = arith.constant 0 : index
    %c0_16 = arith.constant 0 : index
    %c0_17 = arith.constant 0 : index
    %22 = vector.load %arg6[%c0_15, %c0_16, %c0_17] : memref<1x32x16xf32, #tpu.memory_space<vmem>>, vector<1x32x16xf32>
    tpu.vector_store %arg6[%c0_15, %c0_16, %c0_17], %21 {strides = array<i32>} : memref<1x32x16xf32, #tpu.memory_space<vmem>>, vector<1x32x16xf32>,
    return
  }
  func.func @transform_0(%arg0: i32) -> (i32, i32, i32) {
    %c0_i32 = arith.constant 0 : i32
    %c0_i32_0 = arith.constant 0 : i32
    %c0_i32_1 = arith.constant 0 : i32
    return %arg0, %c0_i32, %c0_i32_0 : i32, i32, i32
  }
  func.func @transform_1(%arg0: i32) -> (i32, i32) {
    %c0_i32 = arith.constant 0 : i32
    %c0_i32_0 = arith.constant 0 : i32
    %c0_i32_1 = arith.constant 0 : i32
    return %c0_i32, %c0_i32_0 : i32, i32
  }
  func.func @transform_2(%arg0: i32) -> (i32, i32) {
    %c0_i32 = arith.constant 0 : i32
    %c0_i32_0 = arith.constant 0 : i32
    %c0_i32_1 = arith.constant 0 : i32
    return %c0_i32, %c0_i32_0 : i32, i32
  }
  func.func @transform_3(%arg0: i32) -> (i32, i32) {
    %c0_i32 = arith.constant 0 : i32
    %c0_i32_0 = arith.constant 0 : i32
    %c0_i32_1 = arith.constant 0 : i32
    return %c0_i32, %c0_i32_0 : i32, i32
  }
  func.func @transform_4(%arg0: i32) -> (i32, i32) {
    %c0_i32 = arith.constant 0 : i32
    %c0_i32_0 = arith.constant 0 : i32
    %c0_i32_1 = arith.constant 0 : i32
    return %c0_i32, %c0_i32_0 : i32, i32
  }
  func.func @transform_5(%arg0: i32) -> (i32, i32, i32) {
    %c0_i32 = arith.constant 0 : i32
    %c0_i32_0 = arith.constant 0 : i32
    %c0_i32_1 = arith.constant 0 : i32
    return %arg0, %c0_i32, %c0_i32_0 : i32, i32, i32
  }
}

</mosaic_0001>

<llo_original>
// kernel: tpu_custom_call.1
$region0: #{tpu_custom_call.1}
  #allocation0 [shape = 'u32[]', space=smem, size = 0x4, offset = 0x4, fixed_abs, tag = 'smem constant byte address 0x4 - core index']
  #allocation1 [shape = 'u32[72,128]{1,0:T(1,128)}', space=vmem, size = 0x9000, scoped, tag = 'internal scratch']
  %s0 = inlined_call_operand.vmem [shape: f32[2,32,16], index: 0, kind: input, shape index: {}]
  %s1 = inlined_call_operand.vmem [shape: f32[32,2], index: 1, kind: input, shape index: {}]
  %s2 = inlined_call_operand.vmem [shape: f32[1,2], index: 2, kind: input, shape index: {}]
  %s3 = inlined_call_operand.vmem [shape: f32[2,32], index: 3, kind: input, shape index: {}]
  %s4 = inlined_call_operand.vmem [shape: f32[1,32], index: 4, kind: input, shape index: {}]
  %s5 = inlined_call_operand.vmem [shape: f32[2,32,16], index: 5, kind: output, shape index: {}]
  %s6 = sld [smem:[#allocation0]]
  $region53: #{tpu_custom_call.1} parent=0
    _
  %s8 = ssub.s32 1, %s6
  %s9 = scalar_select 0, %s8, %s6
  loop: start=0, step=1, limit=4
  $region2: #{tpu_custom_call.1} parent=0 // loop_pre_header
    _
  $region3: #{tpu_custom_call.1} parent=0 // loop_header
    %s11 = sphi 0, %s15
    %p12 = scmp.ge.s32.totalorder %s11, 4
    %s21 = sphi 0, %s23
    %s24 = sphi 0, %s21
    %s25 = sphi 0, %s24
    %s41 = sphi 0, %s25
    %s45 = sphi 0, %s45
    %s47 = sphi 0, %s45
    %s48 = sphi 0, %s47
    %s62 = sphi 0, %s48
    %s66 = sphi 0, %s66
    %s68 = sphi 0, %s66
    %s69 = sphi 0, %s68
    %s83 = sphi 0, %s69
    %s87 = sphi 0, %s87
    %s89 = sphi 0, %s87
    %s90 = sphi 0, %s89
    %s104 = sphi 0, %s90
    %s108 = sphi 0, %s108
    %s110 = sphi 0, %s108
    %s111 = sphi 0, %s110
    %s125 = sphi 0, %s111
    %s131 = sphi 0, %s133
    %s134 = sphi 0, %s131
    %s135 = sphi 0, %s134
    %s151 = sphi 0, %s135
  $region4: #{tpu_custom_call.1} parent=0 // loop_header_branch
    %14 = sbr.rel (%p12) target = $region8
  $region5: #{tpu_custom_call.1} parent=0 // loop_body
    %s16 = ssub.s32 %s11, 1
    %s17 = ssub.s32 %s11, 2
    %s18 = sadd.s32 %s11, 1
    %s19 = ssub.s32 %s11, %s18
    %p20 = scmp.eq.s32.totalorder %s19, 0
    %s22 = sadd.s32 %s21, 1
    %s23 = scalar_select %p20, %s21, %s22
    %p26 = pneg %p20
    %p27 = scmp.eq.s32.totalorder %s11, 1
    %p28 = por %p26, %p27
    %p29 = scmp.ne.s32.totalorder %s21, %s24
    %p30 = scmp.eq.s32.totalorder %s11, 0
    %p31 = por %p29, %p30
    %p32 = scmp.ne.s32.totalorder %s21, %s24
    %p33 = scmp.eq.s32.totalorder %s16, 1
    %p34 = por %p32, %p33
    %p35 = scmp.ne.s32.totalorder %s24, %s25
    %p36 = scmp.eq.s32.totalorder %s16, 0
    %p37 = por %p35, %p36
    %p38 = scmp.ne.s32.totalorder %s24, %s25
    %p39 = scmp.eq.s32.totalorder %s17, 1
    %p40 = por %p38, %p39
    %p42 = scmp.ne.s32.totalorder %s25, %s41
    %p43 = scmp.eq.s32.totalorder %s17, 0
    %p44 = por %p42, %p43
    %s46 = sadd.s32 %s45, 1
    %p49 = scmp.eq.s32.totalorder %s11, 1
    %p50 = scmp.ne.s32.totalorder %s45, %s47
    %p51 = scmp.eq.s32.totalorder %s11, 0
    %p52 = por %p50, %p51
    %p53 = scmp.ne.s32.totalorder %s45, %s47
    %p54 = scmp.eq.s32.totalorder %s16, 1
    %p55 = por %p53, %p54
    %p56 = scmp.ne.s32.totalorder %s47, %s48
    %p57 = scmp.eq.s32.totalorder %s16, 0
    %p58 = por %p56, %p57
    %p59 = scmp.ne.s32.totalorder %s47, %s48
    %p60 = scmp.eq.s32.totalorder %s17, 1
    %p61 = por %p59, %p60
    %p63 = scmp.ne.s32.totalorder %s48, %s62
    %p64 = scmp.eq.s32.totalorder %s17, 0
    %p65 = por %p63, %p64
    %s67 = sadd.s32 %s66, 1
    %p70 = scmp.eq.s32.totalorder %s11, 1
    %p71 = scmp.ne.s32.totalorder %s66, %s68
    %p72 = scmp.eq.s32.totalorder %s11, 0
    %p73 = por %p71, %p72
    %p74 = scmp.ne.s32.totalorder %s66, %s68
    %p75 = scmp.eq.s32.totalorder %s16, 1
    %p76 = por %p74, %p75
    %p77 = scmp.ne.s32.totalorder %s68, %s69
    %p78 = scmp.eq.s32.totalorder %s16, 0
    %p79 = por %p77, %p78
    %p80 = scmp.ne.s32.totalorder %s68, %s69
    %p81 = scmp.eq.s32.totalorder %s17, 1
    %p82 = por %p80, %p81
    %p84 = scmp.ne.s32.totalorder %s69, %s83
    %p85 = scmp.eq.s32.totalorder %s17, 0
    %p86 = por %p84, %p85
    %s88 = sadd.s32 %s87, 1
    %p91 = scmp.eq.s32.totalorder %s11, 1
    %p92 = scmp.ne.s32.totalorder %s87, %s89
    %p93 = scmp.eq.s32.totalorder %s11, 0
    %p94 = por %p92, %p93
    %p95 = scmp.ne.s32.totalorder %s87, %s89
    %p96 = scmp.eq.s32.totalorder %s16, 1
    %p97 = por %p95, %p96
    %p98 = scmp.ne.s32.totalorder %s89, %s90
    %p99 = scmp.eq.s32.totalorder %s16, 0
    %p100 = por %p98, %p99
    %p101 = scmp.ne.s32.totalorder %s89, %s90
    %p102 = scmp.eq.s32.totalorder %s17, 1
    %p103 = por %p101, %p102
    %p105 = scmp.ne.s32.totalorder %s90, %s104
    %p106 = scmp.eq.s32.totalorder %s17, 0
    %p107 = por %p105, %p106
    %s109 = sadd.s32 %s108, 1
    %p112 = scmp.eq.s32.totalorder %s11, 1
    %p113 = scmp.ne.s32.totalorder %s108, %s110
    %p114 = scmp.eq.s32.totalorder %s11, 0
    %p115 = por %p113, %p114
    %p116 = scmp.ne.s32.totalorder %s108, %s110
    %p117 = scmp.eq.s32.totalorder %s16, 1
    %p118 = por %p116, %p117
    %p119 = scmp.ne.s32.totalorder %s110, %s111
    %p120 = scmp.eq.s32.totalorder %s16, 0
    %p121 = por %p119, %p120
    %p122 = scmp.ne.s32.totalorder %s110, %s111
    %p123 = scmp.eq.s32.totalorder %s17, 1
    %p124 = por %p122, %p123
    %p126 = scmp.ne.s32.totalorder %s111, %s125
    %p127 = scmp.eq.s32.totalorder %s17, 0
    %p128 = por %p126, %p127
    %s129 = ssub.s32 %s11, %s18
    %p130 = scmp.eq.s32.totalorder %s129, 0
    %s132 = sadd.s32 %s131, 1
    %s133 = scalar_select %p130, %s131, %s132
    %p136 = pneg %p130
    %p137 = scmp.eq.s32.totalorder %s11, 1
    %p138 = por %p136, %p137
    %p139 = scmp.ne.s32.totalorder %s131, %s134
    %p140 = scmp.eq.s32.totalorder %s11, 0
    %p141 = por %p139, %p140
    %p142 = scmp.ne.s32.totalorder %s131, %s134
    %p143 = scmp.eq.s32.totalorder %s16, 1
    %p144 = por %p142, %p143
    %p145 = scmp.ne.s32.totalorder %s134, %s135
    %p146 = scmp.eq.s32.totalorder %s16, 0
    %p147 = por %p145, %p146
    %p148 = scmp.ne.s32.totalorder %s134, %s135
    %p149 = scmp.eq.s32.totalorder %s17, 1
    %p150 = por %p148, %p149
    %p152 = scmp.ne.s32.totalorder %s135, %s151
    %p153 = scmp.eq.s32.totalorder %s17, 0
    %p154 = por %p152, %p153
    %p155 = scmp.le.s32.totalorder 1, %s11
    %p156 = scmp.lt.s32.totalorder %s11, 3
    %p157 = pnand %p155, %p156
    %p158 = pneg %p157
    // Predicated region
    $region9: #{tpu_custom_call.1} parent=5 // pred_check
      _
    $region10: #{tpu_custom_call.1} parent=5 // pred_check_branch
      %160 = sbr.rel (%p157) target = $region12
    $region11: #{tpu_custom_call.1} parent=5 // pred_region
      %s161 = ssub.s32 %s11, 1
      // Predicated region
      $region13: #{tpu_custom_call.1} parent=11 // pred_check
        %p162 = pneg %p58
      $region14: #{tpu_custom_call.1} parent=11 // pred_check_branch
        %164 = sbr.rel (%p162) target = $region16
      $region15: #{tpu_custom_call.1} parent=11 // pred_region
        _
      $region16: #{tpu_custom_call.1} parent=11 // pred_fallthru
        _
      // Predicated region
      $region17: #{tpu_custom_call.1} parent=11 // pred_check
        %p165 = pneg %p79
      $region18: #{tpu_custom_call.1} parent=11 // pred_check_branch
        %167 = sbr.rel (%p165) target = $region20
      $region19: #{tpu_custom_call.1} parent=11 // pred_region
        _
      $region20: #{tpu_custom_call.1} parent=11 // pred_fallthru
        _
      // Predicated region
      $region21: #{tpu_custom_call.1} parent=11 // pred_check
        %p168 = pneg %p100
      $region22: #{tpu_custom_call.1} parent=11 // pred_check_branch
        %170 = sbr.rel (%p168) target = $region24
      $region23: #{tpu_custom_call.1} parent=11 // pred_region
        _
      $region24: #{tpu_custom_call.1} parent=11 // pred_fallthru
        _
      // Predicated region
      $region25: #{tpu_custom_call.1} parent=11 // pred_check
        %p171 = pneg %p121
      $region26: #{tpu_custom_call.1} parent=11 // pred_check_branch
        %173 = sbr.rel (%p171) target = $region28
      $region27: #{tpu_custom_call.1} parent=11 // pred_region
        _
      $region28: #{tpu_custom_call.1} parent=11 // pred_fallthru
        _
    $region12: #{tpu_custom_call.1} parent=5 // pred_fallthru
      _
    %p174 = scmp.lt.s32.totalorder %s11, 2
    // Predicated region
    $region29: #{tpu_custom_call.1} parent=5 // pred_check
      %p175 = pneg %p174
    $region30: #{tpu_custom_call.1} parent=5 // pred_check_branch
      %177 = sbr.rel (%p175) target = $region32
    $region31: #{tpu_custom_call.1} parent=5 // pred_region
      // Predicated region
      $region33: #{tpu_custom_call.1} parent=31 // pred_check
        %p178 = pneg %p31
      $region34: #{tpu_custom_call.1} parent=31 // pred_check_branch
        %180 = sbr.rel (%p178) target = $region36
      $region35: #{tpu_custom_call.1} parent=31 // pred_region
        %p181 = scmp.lt.s32.totalorder %s11, 1
        %s182 = scalar_select %p181, %s11, 1
        %s183 = smul.addr %s182, 4
        %s184 = smul.addr %s183, 8
        %s185 = scalar_lea.vmem %s0, %s184
      $region36: #{tpu_custom_call.1} parent=31 // pred_fallthru
        _
    $region32: #{tpu_custom_call.1} parent=5 // pred_fallthru
      _
    %p186 = scmp.le.s32.totalorder 1, %s11
    %p187 = scmp.lt.s32.totalorder %s11, 3
    %p188 = pnand %p186, %p187
    %p189 = pneg %p188
    // Predicated region
    $region37: #{tpu_custom_call.1} parent=5 // pred_check
      _
    $region38: #{tpu_custom_call.1} parent=5 // pred_check_branch
      %191 = sbr.rel (%p188) target = $region40
    $region39: #{tpu_custom_call.1} parent=5 // pred_region
      %s192 = ssub.s32 %s11, 1
      %p193 = scmp.lt.s32.totalorder %s16, 1
      %s194 = scalar_select %p193, %s16, 1
      %s195 = smul.addr %s194, 4
      %s196 = smul.addr %s195, 8
      %s197 = scalar_lea.vmem %s0, %s196
      %p198 = pneg %p37
      %p199 = pneg %p34
      %p200 = pneg %p58
      %p201 = pneg %p55
      %p202 = pneg %p79
      %p203 = pneg %p76
      %p204 = pneg %p100
      %p205 = pneg %p97
      %p206 = pneg %p121
      %p207 = pneg %p118
      %p208 = pneg %p147
      %p209 = pneg %p144
      %p210 = scmp.lt.s32.totalorder %s16, 1
      %s211 = scalar_select %p210, %s16, 1
      %s212 = smul.addr %s211, 4
      %s213 = smul.addr %s212, 8
      %s214 = scalar_lea.vmem %s5, %s213
      %p215 = scmp.lt.s32.totalorder %s16, 1
      %s216 = scalar_select %p215, %s16, 1
      %s217 = smul.addr %s216, 4
      %s218 = smul.addr %s217, 8
      %s219 = scalar_lea.vmem %s0, %s218
      %p220 = scmp.lt.s32.totalorder %s16, 1
      %s221 = scalar_select %p220, %s16, 1
      %s222 = smul.addr %s221, 4
      %s223 = smul.addr %s222, 8
      %s224 = scalar_lea.vmem %s5, %s223
      %v225 = vld [vmem:[%s219] sm:$0xff]
      %v226 = vld [vmem:[%s219 + $0x8] sm:$0xff]
      %v227 = vld [vmem:[%s219 + $0x10] sm:$0xff]
      %v228 = vld [vmem:[%s219 + $0x18] sm:$0xff]
      %vm229 = vcmask 130048
      %v230 = vsel %vm229, %v225, 0.0
      %231 = vadd.xlane.f32.xlu0 %v230
      %v232 = vpop.xlane.xlu0 %231
      %v233 = vsel %vm229, %v226, 0.0
      %234 = vadd.xlane.f32.xlu0 %v233
      %v235 = vpop.xlane.xlu0 %234
      %v236 = vsel %vm229, %v227, 0.0
      %237 = vadd.xlane.f32.xlu0 %v236
      %v238 = vpop.xlane.xlu0 %237
      %v239 = vsel %vm229, %v228, 0.0
      %240 = vadd.xlane.f32.xlu0 %v239
      %v241 = vpop.xlane.xlu0 %240
      %v242 = vmul.f32 %v232, 0.0625
      %v243 = vmul.f32 %v235, 0.0625
      %v244 = vmul.f32 %v238, 0.0625
      %v245 = vmul.f32 %v241, 0.0625
      %v246 = vld [vmem:[%s1] sm:$0xff]
      %v247 = vld [vmem:[%s1 + $0x8] sm:$0xff]
      %v248 = vld [vmem:[%s1 + $0x10] sm:$0xff]
      %v249 = vld [vmem:[%s1 + $0x18] sm:$0xff]
      %v250 = vld [vmem:[%s2] sm:$0x1]
      %v255 = vlaneseq
      %v256 = vand.u32 %v255, 127
      %v257 = vperm.slane %v242, %v256
      %v258 = vadd.s32 %v256, 4294967288
      %v259 = vperm.slane %v243, %v258
      %vm260 = vcmask 130112
      %v261 = vsel %vm260, %v259, %v257
      %v262 = vadd.s32 %v256, 4294967280
      %v263 = vperm.slane %v244, %v262
      %vm264 = vcmask 195712
      %v265 = vsel %vm264, %v263, %v261
      %v266 = vadd.s32 %v256, 4294967272
      %v267 = vperm.slane %v245, %v266
      %vm268 = vcmask 261312
      %v269 = vsel %vm268, %v267, %v265
      %vm270 = vcmask 261120
      %v271 = vsel %vm270, %v269, 0
      %273 = vmatpush.msra.mxu0 0.0
      %274 = vmatpush.msra.mxu0 0.0
      %275 = vmatpush.msra.mxu0 0.0
      %276 = vmatpush.msra.mxu0 0.0
      %277 = vmatpush.msra.mxu0 0.0
      %278 = vmatpush.msra.mxu0 0.0
      %279 = vmatpush.msra.mxu0 0.0
      %280 = vmatpush.msra.mxu0 0.0
      %281 = vmatpush.msra.mxu0 0.0
      %282 = vmatpush.msra.mxu0 0.0
      %283 = vmatpush.msra.mxu0 0.0
      %284 = vmatpush.msra.mxu0 0.0
      %285 = vmatpush.msra.mxu0 %v249
      %286 = vmatpush.msra.mxu0 %v248
      %287 = vmatpush.msra.mxu0 %v247
      %288 = vmatpush.msra.mxu0 %v246
      %289 = vmatmul.f32.gmra.mxu0 %v271
      %v290 = vpop.f32.mrf.mxu0
      %v291 = vadd.f32 %v250, %v290
      %292 = vdwg.mxu0
      %v293 = vmax.f32 %v291, 0.0
      %v294 = vld [vmem:[%s3] sm:$0x3]
      %v295 = vld [vmem:[%s4] sm:$0x1]
      %vm296 = vcmask 15360
      %v298 = vsel %vm296, %v293, 0
      %vm300 = vcmask 1041408
      %v302 = vsel %vm300, %v294, 0
      %304 = vmatpush.msra.mxu0 0.0
      %305 = vmatpush.msra.mxu0 0.0
      %306 = vmatpush.msra.mxu0 0.0
      %307 = vmatpush.msra.mxu0 0.0
      %308 = vmatpush.msra.mxu0 0.0
      %309 = vmatpush.msra.mxu0 0.0
      %310 = vmatpush.msra.mxu0 0.0
      %311 = vmatpush.msra.mxu0 0.0
      %312 = vmatpush.msra.mxu0 0.0
      %313 = vmatpush.msra.mxu0 0.0
      %314 = vmatpush.msra.mxu0 0.0
      %315 = vmatpush.msra.mxu0 0.0
      %316 = vmatpush.msra.mxu0 0.0
      %317 = vmatpush.msra.mxu0 0.0
      %318 = vmatpush.msra.mxu0 0.0
      %319 = vmatpush.msra.mxu0 %v302
      %320 = vmatmul.f32.gmra.mxu0 %v298
      %v321 = vpop.f32.mrf.mxu0
      %v322 = vadd.f32 %v295, %v321
      %323 = vdwg.mxu0
      %v324 = vxor.u32 %v322, 2147483648
      %v325 = vmul.f32 %v324, 1.442695
      %v326 = vpow.pop %v325
      %v327 = vadd.f32 %v326, 1.0
      %v328 = vrcp.pop %v327
      %v329 = vmul.f32 %v327, %v328
      %v330 = vsub.f32 1.0, %v329
      %v331 = vmul.f32 %v328, %v330
      %v332 = vadd.f32 %v328, %v331
      %vm333 = vweird.f32 %v327
      %vm334 = vweird.f32 %v328
      %vm335 = vmor %vm333, %vm334
      %v336 = vsel %vm335, %v328, %v332
      %v337 = vand.u32 2147483647, %v327
      %vm338 = vcmp.eq.f32.partialorder %v337, 8.507059e+37
      %v339 = vand.u32 %v327, 2147483648
      %v340 = vor.u32 1.1754944e-38, %v339
      %v341 = vsel %vm338, %v340, %v336
      %v342 = vmul.f32 1.0, %v341
      %v343 = vperm.slane %v342, 0
      %v344 = vlaneseq
      %v345 = vshrl.u32 %v344, 7
      %347 = vset.pattern.permute.xlu0 %v345
      %348 = vperm.xlu0 %347, %v343
      %v349 = vpop.permute.xlu0 %348
      %v350 = vlaneseq
      %v351 = vshrl.u32 %v350, 7
      %v352 = vadd.s32 %v351, 8
      %353 = vset.pattern.permute.xlu0 %v352
      %354 = vperm.xlu0 %353, %v343
      %v355 = vpop.permute.xlu0 %354
      %v356 = vlaneseq
      %v357 = vshrl.u32 %v356, 7
      %v358 = vadd.s32 %v357, 16
      %359 = vset.pattern.permute.xlu0 %v358
      %360 = vperm.xlu0 %359, %v343
      %v361 = vpop.permute.xlu0 %360
      %v362 = vlaneseq
      %v363 = vshrl.u32 %v362, 7
      %v364 = vadd.s32 %v363, 24
      %365 = vset.pattern.permute.xlu0 %v364
      %366 = vperm.xlu0 %365, %v343
      %v367 = vpop.permute.xlu0 %366
      %v368 = vmul.f32 %v225, %v349
      %v369 = vmul.f32 %v226, %v355
      %v370 = vmul.f32 %v227, %v361
      %v371 = vmul.f32 %v228, %v367
      %372 = vst.msk [vmem:[%s224] sm:$0xff] %vm229, %v368
      %373 = vst.msk [vmem:[%s224 + $0x8] sm:$0xff] %vm229, %v369
      %374 = vst.msk [vmem:[%s224 + $0x10] sm:$0xff] %vm229, %v370
      %375 = vst.msk [vmem:[%s224 + $0x18] sm:$0xff] %vm229, %v371
      %p376 = scmp.lt.s32.totalorder %s16, 1
      %s377 = scalar_select %p376, %s16, 1
      %s378 = smul.addr %s377, 4
      %s379 = smul.addr %s378, 8
      %s380 = scalar_lea.vmem %s5, %s379
      // Predicated region
      $region41: #{tpu_custom_call.1} parent=39 // pred_check
        %p381 = pneg %p144
      $region42: #{tpu_custom_call.1} parent=39 // pred_check_branch
        %383 = sbr.rel (%p381) target = $region44
      $region43: #{tpu_custom_call.1} parent=39 // pred_region
        _
      $region44: #{tpu_custom_call.1} parent=39 // pred_fallthru
        _
    $region40: #{tpu_custom_call.1} parent=5 // pred_fallthru
      _
    %p384 = scmp.le.s32.totalorder 2, %s11
    // Predicated region
    $region45: #{tpu_custom_call.1} parent=5 // pred_check
      %p385 = pneg %p384
    $region46: #{tpu_custom_call.1} parent=5 // pred_check_branch
      %387 = sbr.rel (%p385) target = $region48
    $region47: #{tpu_custom_call.1} parent=5 // pred_region
      %s388 = ssub.s32 %s11, 2
      // Predicated region
      $region49: #{tpu_custom_call.1} parent=47 // pred_check
        %p389 = pneg %p150
      $region50: #{tpu_custom_call.1} parent=47 // pred_check_branch
        %391 = sbr.rel (%p389) target = $region52
      $region51: #{tpu_custom_call.1} parent=47 // pred_region
        %p392 = scmp.lt.s32.totalorder %s17, 1
        %s393 = scalar_select %p392, %s17, 1
        %s394 = smul.addr %s393, 4
        %s395 = smul.addr %s394, 8
        %s396 = scalar_lea.vmem %s5, %s395
      $region52: #{tpu_custom_call.1} parent=47 // pred_fallthru
        _
    $region48: #{tpu_custom_call.1} parent=5 // pred_fallthru
      _
  $region6: #{tpu_custom_call.1} parent=0 // loop_footer
    %s15 = sadd.s32 1, %s11
  $region7: #{tpu_custom_call.1} parent=0 // loop_footer_branch
    %10 = sbr.rel target = $region3
  $region8: #{tpu_custom_call.1} parent=0 // loop_exit
    _

</llo_original>
